<compile_context>
chip_gen: v6e
topology: v6e:2x2x1
jax: 0.10.0
libtpu: 0.0.40
codegen_flags: <defaults>
</compile_context>

<pallas_src>
import functools

import jax
import jax.numpy as jnp
from jax.experimental import pallas as pl
from jax.experimental.pallas import tpu as pltpu


def _mse_pair_loss_kernel(a_ref, b_ref, lab_ref, out_ref, *,
                          batch_size, padded_rows, tile_rows):
    i = pl.program_id(0)

    @pl.when(i == 0)
    def _():
        out_ref[...] = jnp.zeros_like(out_ref)

    a = a_ref[...].astype(jnp.float32)                       # [TB, D]
    b = b_ref[...].astype(jnp.float32)                       # [TB, D]

    # Per-row inverse norm of rep_a (rsqrt on EUP, per-row only).
    sumsq_a = jnp.sum(a * a, axis=1, keepdims=True)          # [TB, 1]
    inv_a = jax.lax.rsqrt(sumsq_a)                           # [TB, 1]
    # ||a_normalized||^2 == sumsq_a * inv_a^2 (~1): reuse the per-row scalar
    # instead of re-squaring / re-reducing the full [TB, D] tile.
    inv_b = jax.lax.rsqrt(sumsq_a * inv_a * inv_a)           # [TB, 1]

    # Fused normalized difference; a_n / b_n never materialized.
    diff = a * inv_a - b * inv_b                             # [TB, D]
    distance = jnp.mean(diff * diff, axis=1, keepdims=True)  # [TB, 1]

    labels = lab_ref[...].astype(jnp.float32)                # [TB, 1]
    err = distance - labels                                  # [TB, 1]

    if padded_rows > batch_size:
        row0 = i * tile_rows
        row_ids = row0 + jax.lax.broadcasted_iota(jnp.int32, err.shape, 0)
        err = jnp.where(row_ids < batch_size, err, jnp.float32(0.0))

    out_ref[...] = out_ref[...] + jnp.sum(err * err)

    @pl.when(i == pl.num_programs(0) - 1)
    def _():
        out_ref[...] = out_ref[...] * jnp.float32(1.0 / batch_size)


def _pick_tile_rows(B, D, itemsize):
    """Keep 2 inputs x 2 pipeline buffers x TB*D*itemsize under ~16 MiB."""
    budget = 16 * 1024 * 1024
    tb = budget // (4 * D * max(int(itemsize), 1))
    tb = max(8, (min(tb, 1024) // 8) * 8)
    # No point tiling finer than the (sublane-padded) batch.
    tb = min(tb, max(8, pl.cdiv(B, 8) * 8))
    return tb


def mse_pair_loss(rep_a, rep_b, labels, *, tile_rows=None):
    """rep_a, rep_b: [B, D]; labels: [B]. Returns scalar f32 loss."""
    B, D = rep_a.shape
    itemsize = jnp.dtype(rep_a.dtype).itemsize
    if tile_rows is None:
        tile_rows = _pick_tile_rows(B, D, itemsize)

    n_tiles = pl.cdiv(B, tile_rows)
    padded_rows = n_tiles * tile_rows
    pad = padded_rows - B
    if pad:
        rep_a = jnp.pad(rep_a, ((0, pad), (0, 0)))
        rep_b = jnp.pad(rep_b, ((0, pad), (0, 0)))
        labels = jnp.pad(labels, ((0, pad),))
    labels2d = labels.reshape(padded_rows, 1).astype(jnp.float32)

    kernel = functools.partial(
        _mse_pair_loss_kernel,
        batch_size=B, padded_rows=padded_rows, tile_rows=tile_rows)

    cost = pl.CostEstimate(
        flops=10 * B * D,
        transcendentals=2 * B,
        bytes_accessed=2 * B * D * int(itemsize) + B * 4 + 4,
    )

    out = pl.pallas_call(
        kernel,
        out_shape=jax.ShapeDtypeStruct((1, 1), jnp.float32),
        grid_spec=pltpu.PrefetchScalarGridSpec(
            num_scalar_prefetch=0,
            grid=(n_tiles,),
            in_specs=[
                pl.BlockSpec((tile_rows, D), lambda i: (i, 0)),
                pl.BlockSpec((tile_rows, D), lambda i: (i, 0)),
                pl.BlockSpec((tile_rows, 1), lambda i: (i, 0)),
            ],
            out_specs=pl.BlockSpec((1, 1), lambda i: (0, 0)),
        ),
        compiler_params=pltpu.CompilerParams(
            dimension_semantics=("arbitrary",),
            vmem_limit_bytes=32 * 1024 * 1024,
        ),
        cost_estimate=cost,
    )(rep_a, rep_b, labels2d)
    return out[0, 0]


def tiny_encoder(token_feats, w):
    """Deterministic stand-in for `self.model`: mean-pool tokens, linear proj.

    token_feats: [B, S, H]; w: [H, D] -> sentence_embedding [B, D].
    (Plain-JAX glue; the loss hot path is in the Pallas kernel.)
    """
    pooled = jnp.mean(token_feats, axis=1)            # [B, H]
    return jnp.dot(pooled, w)                         # [B, D]


if __name__ == "__main__":
    key = jax.random.PRNGKey(0)
    k1, k2, k3, k4 = jax.random.split(key, 4)

    B, S, H, D = 8, 8, 32, 128

    # Deterministic "model" weights and two batches of token features.
    w = jax.random.normal(k1, (H, D), dtype=jnp.float32) * 0.05
    feats_a = jax.random.normal(k2, (B, S, H), dtype=jnp.float32)
    feats_b = jax.random.normal(k3, (B, S, H), dtype=jnp.float32)
    labels = jax.random.uniform(k4, (B,), dtype=jnp.float32)

    rep_a = tiny_encoder(feats_a, w)                  # [B, D]
    rep_b = tiny_encoder(feats_b, w)                  # [B, D]

    loss = mse_pair_loss(rep_a, rep_b, labels)
    loss = jax.block_until_ready(loss)

    # Reference check in plain JAX (literal quirky semantics of the module).
    norm_a = jnp.linalg.norm(rep_a, axis=1, keepdims=True)
    a_n = rep_a / norm_a
    norm_a2 = jnp.linalg.norm(a_n, axis=1, keepdims=True)
    b_n = rep_b / norm_a2
    dist = jnp.mean((a_n - b_n) ** 2, axis=1)
    ref = jnp.mean((dist - labels) ** 2)
    assert jnp.allclose(loss, ref, rtol=1e-5, atol=1e-6), (loss, ref)

    print("KERNEL_OK")
</pallas_src>

<mosaic_0001>
module attributes {stable_mosaic.version = 11 : i64} {
  func.func @_mse_pair_loss_kernel(%arg0: i32, %arg1: memref<8x128xf32, #tpu.memory_space<vmem>>, %arg2: memref<8x128xf32, #tpu.memory_space<vmem>>, %arg3: memref<8x1xf32, #tpu.memory_space<vmem>>, %arg4: memref<1x1xf32, #tpu.memory_space<vmem>>) attributes {dimension_semantics = [#tpu.dimension_semantics<arbitrary>], iteration_bounds = array<i64: 1>, scalar_prefetch = 0 : i64, scratch_operands = 0 : i64, tpu.core_type = #tpu.core_type<tc>, window_params = [{transform_indices = @transform_0, window_bounds = array<i64: 8, 128>}, {transform_indices = @transform_1, window_bounds = array<i64: 8, 128>}, {transform_indices = @transform_2, window_bounds = array<i64: 8, 1>}, {pipeline_mode = #tpu.pipeline_mode<synchronous>, transform_indices = @transform_3, window_bounds = array<i64: 1, 1>}]} {
    %c0_i32 = arith.constant 0 : i32
    %0 = arith.cmpi eq, %arg0, %c0_i32 : i32
    %1 = arith.extui %0 : i1 to i32
    %c0_i32_0 = arith.constant 0 : i32
    %2 = arith.cmpi ne, %1, %c0_i32_0 : i32
    scf.if %2 {
      %cst_15 = arith.constant 0.000000e+00 : f32
      %36 = vector.broadcast %cst_15 : f32 to vector<1x1xf32>
      %c0_16 = arith.constant 0 : index
      %c0_17 = arith.constant 0 : index
      %37 = vector.load %arg4[%c0_16, %c0_17] : memref<1x1xf32, #tpu.memory_space<vmem>>, vector<1x1xf32>
      tpu.vector_store %arg4[%c0_16, %c0_17], %36 {strides = array<i32>} : memref<1x1xf32, #tpu.memory_space<vmem>>, vector<1x1xf32>,
    } else {
    }
    %c0 = arith.constant 0 : index
    %c0_1 = arith.constant 0 : index
    %3 = vector.load %arg1[%c0, %c0_1] : memref<8x128xf32, #tpu.memory_space<vmem>>, vector<8x128xf32>
    %c0_2 = arith.constant 0 : index
    %c0_3 = arith.constant 0 : index
    %4 = vector.load %arg2[%c0_2, %c0_3] : memref<8x128xf32, #tpu.memory_space<vmem>>, vector<8x128xf32>
    %5 = arith.mulf %3, %3 : vector<8x128xf32>
    %cst = arith.constant dense<0.000000e+00> : vector<8xf32>
    %6 = vector.multi_reduction <add>, %5, %cst [1] : vector<8x128xf32> to vector<8xf32>
    %7 = vector.shape_cast %6 : vector<8xf32> to vector<8x1xf32>
    %8 = math.rsqrt %7 : vector<8x1xf32>
    %9 = arith.mulf %7, %8 : vector<8x1xf32>
    %10 = arith.mulf %9, %8 : vector<8x1xf32>
    %11 = math.rsqrt %10 : vector<8x1xf32>
    %12 = vector.broadcast %8 : vector<8x1xf32> to vector<8x128xf32>
    %13 = arith.mulf %3, %12 : vector<8x128xf32>
    %14 = vector.broadcast %11 : vector<8x1xf32> to vector<8x128xf32>
    %15 = arith.mulf %4, %14 : vector<8x128xf32>
    %16 = arith.subf %13, %15 : vector<8x128xf32>
    %17 = arith.mulf %16, %16 : vector<8x128xf32>
    %cst_4 = arith.constant dense<0.000000e+00> : vector<8xf32>
    %18 = vector.multi_reduction <add>, %17, %cst_4 [1] : vector<8x128xf32> to vector<8xf32>
    %19 = vector.shape_cast %18 : vector<8xf32> to vector<8x1xf32>
    %cst_5 = arith.constant 1.280000e+02 : f32
    %20 = vector.broadcast %cst_5 : f32 to vector<8x1xf32>
    %21 = arith.divf %19, %20 : vector<8x1xf32>
    %c0_6 = arith.constant 0 : index
    %c0_7 = arith.constant 0 : index
    %22 = vector.load %arg3[%c0_6, %c0_7] : memref<8x1xf32, #tpu.memory_space<vmem>>, vector<8x1xf32>
    %23 = arith.subf %21, %22 : vector<8x1xf32>
    %c0_8 = arith.constant 0 : index
    %c0_9 = arith.constant 0 : index
    %24 = vector.load %arg4[%c0_8, %c0_9] : memref<1x1xf32, #tpu.memory_space<vmem>>, vector<1x1xf32>
    %25 = arith.mulf %23, %23 : vector<8x1xf32>
    %26 = vector.shape_cast %25 : vector<8x1xf32> to vector<1x8x1xf32>
    %cst_10 = arith.constant dense<0.000000e+00> : vector<1xf32>
    %27 = vector.multi_reduction <add>, %26, %cst_10 [1, 2] : vector<1x8x1xf32> to vector<1xf32>
    %28 = vector.shape_cast %27 : vector<1xf32> to vector<1x1x1xf32>
    %29 = vector.extract %28[0, 0, 0] : f32 from vector<1x1x1xf32>
    %30 = vector.broadcast %29 : f32 to vector<1x1xf32>
    %31 = arith.addf %24, %30 : vector<1x1xf32>
    %c0_11 = arith.constant 0 : index
    %c0_12 = arith.constant 0 : index
    %32 = vector.load %arg4[%c0_11, %c0_12] : memref<1x1xf32, #tpu.memory_space<vmem>>, vector<1x1xf32>
    tpu.vector_store %arg4[%c0_11, %c0_12], %31 {strides = array<i32>} : memref<1x1xf32, #tpu.memory_space<vmem>>, vector<1x1xf32>,
    %c0_i32_13 = arith.constant 0 : i32
    %33 = arith.cmpi eq, %arg0, %c0_i32_13 : i32
    %34 = arith.extui %33 : i1 to i32
    %c0_i32_14 = arith.constant 0 : i32
    %35 = arith.cmpi ne, %34, %c0_i32_14 : i32
    scf.if %35 {
      %c0_15 = arith.constant 0 : index
      %c0_16 = arith.constant 0 : index
      %36 = vector.load %arg4[%c0_15, %c0_16] : memref<1x1xf32, #tpu.memory_space<vmem>>, vector<1x1xf32>
      %cst_17 = arith.constant 1.250000e-01 : f32
      %37 = vector.broadcast %cst_17 : f32 to vector<1x1xf32>
      %38 = arith.mulf %36, %37 : vector<1x1xf32>
      %c0_18 = arith.constant 0 : index
      %c0_19 = arith.constant 0 : index
      %39 = vector.load %arg4[%c0_18, %c0_19] : memref<1x1xf32, #tpu.memory_space<vmem>>, vector<1x1xf32>
      tpu.vector_store %arg4[%c0_18, %c0_19], %38 {strides = array<i32>} : memref<1x1xf32, #tpu.memory_space<vmem>>, vector<1x1xf32>,
    } else {
    }
    return
  }
  func.func @transform_0(%arg0: i32) -> (i32, i32) {
    %c0_i32 = arith.constant 0 : i32
    %c0_i32_0 = arith.constant 0 : i32
    return %arg0, %c0_i32 : i32, i32
  }
  func.func @transform_1(%arg0: i32) -> (i32, i32) {
    %c0_i32 = arith.constant 0 : i32
    %c0_i32_0 = arith.constant 0 : i32
    return %arg0, %c0_i32 : i32, i32
  }
  func.func @transform_2(%arg0: i32) -> (i32, i32) {
    %c0_i32 = arith.constant 0 : i32
    %c0_i32_0 = arith.constant 0 : i32
    return %arg0, %c0_i32 : i32, i32
  }
  func.func @transform_3(%arg0: i32) -> (i32, i32) {
    %c0_i32 = arith.constant 0 : i32
    %c0_i32_0 = arith.constant 0 : i32
    %c0_i32_1 = arith.constant 0 : i32
    return %c0_i32, %c0_i32_0 : i32, i32
  }
}

</mosaic_0001>

<llo_original>
// kernel: tpu_custom_call.1
$region0: #{tpu_custom_call.1}
  #allocation0 [shape = 'u32[]', space=smem, size = 0x4, offset = 0x4, fixed_abs, tag = 'smem constant byte address 0x4 - core index']
  #allocation1 [shape = 'u32[144,128]{1,0:T(1,128)}', space=vmem, size = 0x12000, scoped, tag = 'internal scratch']
  %s0 = inlined_call_operand.vmem [shape: f32[8,128], index: 0, kind: input, shape index: {}]
  %s1 = inlined_call_operand.hbm [shape: f32[8,128], index: 1, kind: input, shape index: {}]
  %s2 = inlined_call_operand.vmem [shape: f32[8,1], index: 2, kind: input, shape index: {}]
  %s3 = inlined_call_operand.hbm [shape: f32[1,1], index: 3, kind: output, shape index: {}]
  %s4 = sld [smem:[#allocation0]]
  $region34: #{tpu_custom_call.1} parent=0
    _
  %s6 = ssub.s32 1, %s4
  %s7 = scalar_select 0, %s6, %s4
  $region1: #{tpu_custom_call.1} parent=0
    #allocation2 [shape = 'u8[4096]{0}', space=vmem, size = 0x1000, scoped, tag = 'input window, operand 1, single buffered']
    #allocation3 [shape = 's32[1]{0}', space=sflag, size = 0x4, scoped, tag = 'scoped memory for tpu_custom_call.1']
    #allocation4 [shape = 's32[1]{0}', space=sflag, size = 0x4, scoped, tag = 'scoped memory for tpu_custom_call.1']
    #allocation5 [shape = 'u8[512]{0}', space=vmem, size = 0x400, scoped, tag = 'output window, operand 0, single buffered']
    %8 = vsyncpa [#allocation3], 0
    %9 = vsyncpa [#allocation4], 0
    // Predicated region
    $region2: #{tpu_custom_call.1} parent=1 // pred_check
      _
    $region3: #{tpu_custom_call.1} parent=1 // pred_check_branch
      %11 = sbr.rel (0) target = $region5
    $region4: #{tpu_custom_call.1} parent=1 // pred_region
      _
    $region5: #{tpu_custom_call.1} parent=1 // pred_fallthru
      _
    // Predicated region
    $region6: #{tpu_custom_call.1} parent=1 // pred_check
      _
    $region7: #{tpu_custom_call.1} parent=1 // pred_check_branch
      %13 = sbr.rel (0) target = $region9
    $region8: #{tpu_custom_call.1} parent=1 // pred_region
      %s15 = ssub.s32 128, 128
      %16 = vsyncadd [#allocation3], %s15
      %s18 = sshll.u32 [#allocation2], 4
      %s19 = int_to_ptr.vmem [resolvable:$true] %s18
      %21 = dma.hbm_to_vmem [thread:$0]  %s1, 128, %s19, [#allocation3]
    $region9: #{tpu_custom_call.1} parent=1 // pred_fallthru
      _
    // Predicated region
    $region10: #{tpu_custom_call.1} parent=1 // pred_check
      _
    $region11: #{tpu_custom_call.1} parent=1 // pred_check_branch
      %23 = sbr.rel (0) target = $region13
    $region12: #{tpu_custom_call.1} parent=1 // pred_region
      _
    $region13: #{tpu_custom_call.1} parent=1 // pred_fallthru
      _
    // Predicated region
    $region14: #{tpu_custom_call.1} parent=1 // pred_check
      _
    $region15: #{tpu_custom_call.1} parent=1 // pred_check_branch
      %25 = sbr.rel (0) target = $region17
    $region16: #{tpu_custom_call.1} parent=1 // pred_region
      %26 = dma.done [#allocation3], 128
    $region17: #{tpu_custom_call.1} parent=1 // pred_fallthru
      _
    %p27 = scmp.eq.s32.totalorder 0, 0
    // Predicated region
    $region18: #{tpu_custom_call.1} parent=1 // pred_check
      %p28 = pneg %p27
    $region19: #{tpu_custom_call.1} parent=1 // pred_check_branch
      %30 = sbr.rel (%p28) target = $region21
    $region20: #{tpu_custom_call.1} parent=1 // pred_region
      %vm31 = vcmask 0
      %32 = vst.msk [vmem:[#allocation5] sm:$0x1] %vm31, 0.0
    $region21: #{tpu_custom_call.1} parent=1 // pred_fallthru
      _
    %v33 = vld [vmem:[%s0] sm:$0xff]
    %v34 = vld [vmem:[#allocation2] sm:$0xff]
    %v35 = vmul.f32 %v33, %v33
    %36 = vadd.xlane.f32.xlu0 %v35
    %v37 = vpop.xlane.xlu0 %36
    %v38 = vrsqrt.pop %v37
    %v39 = vmul.f32 %v37, %v38
    %v40 = vmul.f32 %v39, %v38
    %v41 = vrsqrt.pop %v40
    %v42 = vmul.f32 %v33, %v38
    %v43 = vmul.f32 %v34, %v41
    %v44 = vsub.f32 %v42, %v43
    %v45 = vmul.f32 %v44, %v44
    %46 = vadd.xlane.f32.xlu0 %v45
    %v47 = vpop.xlane.xlu0 %46
    %v48 = vrcp.pop 128.0
    %v49 = vmul.f32 %v47, %v48
    %v50 = vld [vmem:[%s2] sm:$0xff]
    %v51 = vsub.f32 %v49, %v50
    %v52 = vld [vmem:[#allocation5] sm:$0x1]
    %v53 = vmul.f32 %v51, %v51
    %vm54 = vcmask 7168
    %v55 = vsel %vm54, %v53, 0.0
    %56 = vadd.xlane.f32.xlu0 %v55
    %v57 = vpop.xlane.xlu0 %56
    %v58 = vrot.slane %v57, 4
    %v59 = vadd.f32 %v57, %v58
    %v60 = vrot.slane %v59, 2
    %v61 = vadd.f32 %v59, %v60
    %v62 = vrot.slane %v61, 1
    %v63 = vadd.f32 %v61, %v62
    %s64 = vtos %v63
    %v65 = vstv %s64
    %v66 = vadd.f32 %v52, %v65
    %vm67 = vcmask 0
    %68 = vst.msk [vmem:[#allocation5] sm:$0x1] %vm67, %v66
    // Predicated region
    $region22: #{tpu_custom_call.1} parent=1 // pred_check
      %p69 = pneg %p27
    $region23: #{tpu_custom_call.1} parent=1 // pred_check_branch
      %71 = sbr.rel (%p69) target = $region25
    $region24: #{tpu_custom_call.1} parent=1 // pred_region
      %v72 = vld [vmem:[#allocation5] sm:$0x1]
      %v73 = vmul.f32 %v72, 0.125
      %74 = vst.msk [vmem:[#allocation5] sm:$0x1] %vm67, %v73
    $region25: #{tpu_custom_call.1} parent=1 // pred_fallthru
      _
    // Predicated region
    $region26: #{tpu_custom_call.1} parent=1 // pred_check
      _
    $region27: #{tpu_custom_call.1} parent=1 // pred_check_branch
      %76 = sbr.rel (0) target = $region29
    $region28: #{tpu_custom_call.1} parent=1 // pred_region
      %s78 = ssub.s32 16, 16
      %79 = vsyncadd [#allocation4], %s78
      %s81 = sshll.u32 [#allocation5], 4
      %s82 = int_to_ptr.vmem [resolvable:$true] %s81
      %84 = dma.vmem_to_hbm [thread:$0]  %s82, 16, %s3, [#allocation4]
    $region29: #{tpu_custom_call.1} parent=1 // pred_fallthru
      _
    // Predicated region
    $region30: #{tpu_custom_call.1} parent=1 // pred_check
      _
    $region31: #{tpu_custom_call.1} parent=1 // pred_check_branch
      %86 = sbr.rel (0) target = $region33
    $region32: #{tpu_custom_call.1} parent=1 // pred_region
      %87 = dma.done [#allocation4], 16
    $region33: #{tpu_custom_call.1} parent=1 // pred_fallthru
      _
    %88 = vsyncpa [#allocation3], 1
    %89 = vsyncpa [#allocation4], 1

</llo_original>
